<compile_context>
chip_gen: v7x
topology: tpu7x:2x2x1
jax: 0.10.0
libtpu: 0.0.40
codegen_flags: <defaults>
</compile_context>

<pallas_src>
import functools

import jax
import jax.numpy as jnp
from jax.experimental import pallas as pl
from jax.experimental.pallas import tpu as pltpu

BN_EPS = 1e-5


def _round_up(x, m):
    return (x + m - 1) // m * m


def _conv_stats_kernel(patches_ref, w_ref, y_ref, stats_ref):
    # patches_ref: (TM, K_pad) f32      -- im2col rows for this M-tile
    # w_ref:       (K_pad, C_pad) f32   -- conv weight (constant across grid)
    # y_ref:       (TM, C_pad) f32      -- conv output tile
    # stats_ref:   (2, C_pad) f32       -- per-tile partial [sum, sum-of-squares]
    y = jnp.dot(patches_ref[...], w_ref[...], preferred_element_type=jnp.float32)
    y_ref[...] = y
    stats_ref[...] = jnp.concatenate(
        [jnp.sum(y, axis=0, keepdims=True),
         jnp.sum(y * y, axis=0, keepdims=True)], axis=0)


def _bn_relu_apply_kernel(y_ref, scale_ref, shift_ref, o_ref):
    # Pre-folded BN: one fused multiply-add + max per element.
    o_ref[...] = jnp.maximum(y_ref[...] * scale_ref[...] + shift_ref[...], 0.0)


def conv2d_bn_relu(x_nchw, weight_oihw, gamma, beta, *, stride=1, padding=0, tile_m=512):
    """Forward of Conv2dBnReLu (bias=False conv, train-mode BN, ReLU).

    x_nchw:      (N, C_in, H, W) float32
    weight_oihw: (C_out, C_in, KH, KW)
    gamma, beta: (C_out,)
    returns:     (N, C_out, H_out, W_out) (NCHW, matching PyTorch)
    """
    n, c_in, h, w = x_nchw.shape
    c_out, c_in_w, kh, kw = weight_oihw.shape
    assert c_in == c_in_w
    s, p = stride, padding
    h_out = (h + 2 * p - kh) // s + 1
    w_out = (w + 2 * p - kw) // s + 1

    m = n * h_out * w_out
    k = kh * kw * c_in

    # Padded / lane-dense sizes.
    c_pad = _round_up(c_out, 128)          # lane-dense output (unmasked vst, full MXU N)
    k_pad = _round_up(k, 8)                # sublane-aligned contraction dim
    tm = _round_up(min(tile_m, _round_up(m, 8)), 8)
    m_pad = _round_up(m, tm)
    num_tiles = m_pad // tm

    # ---- glue: layout + im2col (pure slicing/reshape, no arithmetic) ----
    x_nhwc = jnp.transpose(x_nchw, (0, 2, 3, 1))
    x_sp = jnp.pad(x_nhwc, ((0, 0), (p, p), (p, p), (0, 0)))
    cols = []
    for i in range(kh):
        for j in range(kw):
            cols.append(x_sp[:, i:i + s * h_out:s, j:j + s * w_out:s, :])
    patches = jnp.concatenate(cols, axis=-1).reshape(m, k)
    # Zero-pad M and K; zero rows contribute nothing to the BN sums so stats stay exact.
    patches = jnp.pad(patches, ((0, m_pad - m), (0, k_pad - k))).astype(jnp.float32)

    # PyTorch OIHW -> (kh, kw, c_in, c_out) -> (K, C_out), matching patch ordering.
    w_mat = jnp.transpose(weight_oihw, (2, 3, 1, 0)).reshape(k, c_out)
    w_mat = jnp.pad(w_mat, ((0, k_pad - k), (0, c_pad - c_out))).astype(jnp.float32)

    gamma_p = jnp.pad(gamma.astype(jnp.float32), (0, c_pad - c_out))
    beta_p = jnp.pad(beta.astype(jnp.float32), (0, c_pad - c_out))

    # ---- pass 1: tiled conv matmul + per-tile BN partial sums ----
    flops = 2 * m_pad * k_pad * c_pad
    bytes_accessed = (patches.size * 4 + w_mat.size * 4
                      + m_pad * c_pad * 4 + num_tiles * 2 * c_pad * 4)
    y_conv, partial_stats = pl.pallas_call(
        _conv_stats_kernel,
        out_shape=(jax.ShapeDtypeStruct((m_pad, c_pad), jnp.float32),
                   jax.ShapeDtypeStruct((num_tiles, 2, c_pad), jnp.float32)),
        grid=(num_tiles,),
        in_specs=[
            pl.BlockSpec((tm, k_pad), lambda i: (i, 0)),
            pl.BlockSpec((k_pad, c_pad), lambda i: (0, 0)),
        ],
        out_specs=(
            pl.BlockSpec((tm, c_pad), lambda i: (i, 0)),
            pl.BlockSpec((None, 2, c_pad), lambda i: (i, 0, 0)),
        ),
        compiler_params=pltpu.CompilerParams(
            dimension_semantics=("parallel",),
            vmem_limit_bytes=32 * 1024 * 1024),
        cost_estimate=pl.CostEstimate(flops=flops, transcendentals=0,
                                      bytes_accessed=bytes_accessed),
    )(patches, w_mat)

    # ---- finalize (tiny, C_out-sized): exact batch stats + pre-folded BN scale/shift ----
    sums = jnp.sum(partial_stats, axis=0)               # (2, c_pad)
    mean = sums[0] / m                                   # divide by TRUE row count
    var = jnp.maximum(sums[1] / m - mean * mean, 0.0)    # biased variance (train mode)
    inv_std = jax.lax.rsqrt(var + BN_EPS)
    scale = (gamma_p * inv_std).reshape(1, c_pad)
    shift = (beta_p - mean * gamma_p * inv_std).reshape(1, c_pad)

    # ---- pass 2: in-place (aliased) scale/shift + ReLU ----
    out_flat = pl.pallas_call(
        _bn_relu_apply_kernel,
        out_shape=jax.ShapeDtypeStruct((m_pad, c_pad), jnp.float32),
        grid=(num_tiles,),
        in_specs=[
            pl.BlockSpec((tm, c_pad), lambda i: (i, 0)),
            pl.BlockSpec((1, c_pad), lambda i: (0, 0)),
            pl.BlockSpec((1, c_pad), lambda i: (0, 0)),
        ],
        out_specs=pl.BlockSpec((tm, c_pad), lambda i: (i, 0)),
        input_output_aliases={0: 0},
        compiler_params=pltpu.CompilerParams(
            dimension_semantics=("parallel",),
            vmem_limit_bytes=32 * 1024 * 1024),
    )(y_conv, scale, shift)

    out = out_flat[:m, :c_out].reshape(n, h_out, w_out, c_out)
    return jnp.transpose(out, (0, 3, 1, 2))              # back to NCHW


def _reference(x_nchw, weight_oihw, gamma, beta, *, stride=1, padding=0):
    """Pure-JAX reference implementing the same semantics (sanity check)."""
    x_nhwc = jnp.transpose(x_nchw, (0, 2, 3, 1))
    w_hwio = jnp.transpose(weight_oihw, (2, 3, 1, 0))
    y = jax.lax.conv_general_dilated(
        x_nhwc, w_hwio, window_strides=(stride, stride),
        padding=[(padding, padding), (padding, padding)],
        dimension_numbers=("NHWC", "HWIO", "NHWC"))
    mean = jnp.mean(y, axis=(0, 1, 2), keepdims=True)
    var = jnp.mean((y - mean) ** 2, axis=(0, 1, 2), keepdims=True)  # biased (train mode)
    yn = (y - mean) * jax.lax.rsqrt(var + BN_EPS)
    out = jnp.maximum(yn * gamma.reshape(1, 1, 1, -1) + beta.reshape(1, 1, 1, -1), 0.0)
    return jnp.transpose(out, (0, 3, 1, 2))


if __name__ == "__main__":
    # Small, deterministic instance: Conv2dBnReLu(in_channels=4, out_channels=8,
    # kernel_size=3, stride=1, padding=1, bias=False)
    N, C_IN, H, W = 2, 4, 16, 16
    C_OUT, KH, KW = 8, 3, 3
    STRIDE, PAD = 1, 1

    key = jax.random.PRNGKey(0)
    kx, kw_ = jax.random.split(key)
    x = jax.random.normal(kx, (N, C_IN, H, W), dtype=jnp.float32)
    fan_in = C_IN * KH * KW
    bound = (6.0 / fan_in) ** 0.5
    weight = jax.random.uniform(kw_, (C_OUT, C_IN, KH, KW),
                                minval=-bound, maxval=bound, dtype=jnp.float32)
    gamma = 1.0 + 0.1 * jnp.arange(C_OUT, dtype=jnp.float32)
    beta = 0.05 * jnp.arange(C_OUT, dtype=jnp.float32)

    # tile_m=128 so the multi-tile stats-accumulation path is exercised (M = 512 -> 4 tiles).
    fwd = jax.jit(functools.partial(conv2d_bn_relu, stride=STRIDE, padding=PAD, tile_m=128))
    out = fwd(x, weight, gamma, beta)
    out = jax.block_until_ready(out)

    ref = _reference(x, weight, gamma, beta, stride=STRIDE, padding=PAD)
    assert out.shape == (N, C_OUT, H, W), out.shape
    assert jnp.allclose(out, ref, rtol=1e-2, atol=1e-2), "mismatch vs reference"

    print("KERNEL_OK")
</pallas_src>

<mosaic_0001>
module attributes {stable_mosaic.version = 11 : i64} {
  func.func @_conv_stats_kernel(%arg0: i32, %arg1: memref<128x40xf32, #tpu.memory_space<vmem>>, %arg2: memref<40x128xf32, #tpu.memory_space<vmem>>, %arg3: memref<128x128xf32, #tpu.memory_space<vmem>>, %arg4: memref<1x2x128xf32, #tpu.memory_space<vmem>>) attributes {dimension_semantics = [#tpu.dimension_semantics<parallel>], iteration_bounds = array<i64: 4>, scalar_prefetch = 0 : i64, scratch_operands = 0 : i64, tpu.core_type = #tpu.core_type<tc>, window_params = [{transform_indices = @transform_0, window_bounds = array<i64: 128, 40>}, {pipeline_mode = #tpu.pipeline_mode<synchronous>, transform_indices = @transform_1, window_bounds = array<i64: 40, 128>}, {transform_indices = @transform_2, window_bounds = array<i64: 128, 128>}, {transform_indices = @transform_3, window_bounds = array<i64: 1, 2, 128>}]} {
    %c0 = arith.constant 0 : index
    %c0_0 = arith.constant 0 : index
    %0 = vector.load %arg1[%c0, %c0_0] : memref<128x40xf32, #tpu.memory_space<vmem>>, vector<128x40xf32>
    %c0_1 = arith.constant 0 : index
    %c0_2 = arith.constant 0 : index
    %1 = vector.load %arg2[%c0_1, %c0_2] : memref<40x128xf32, #tpu.memory_space<vmem>>, vector<40x128xf32>
    %cst = arith.constant dense<0.000000e+00> : vector<128x128xf32>
    %2 = tpu.matmul %0, %1, %cst {dimension_numbers = #tpu.dot_dimension_numbers<[1], [0], [0], [1], [0, 0, 1, 1], [], []>} : vector<128x40xf32>, vector<40x128xf32>, vector<128x128xf32> -> vector<128x128xf32>
    %c0_3 = arith.constant 0 : index
    %c0_4 = arith.constant 0 : index
    %3 = vector.load %arg3[%c0_3, %c0_4] : memref<128x128xf32, #tpu.memory_space<vmem>>, vector<128x128xf32>
    tpu.vector_store %arg3[%c0_3, %c0_4], %2 {strides = array<i32>} : memref<128x128xf32, #tpu.memory_space<vmem>>, vector<128x128xf32>,
    %cst_5 = arith.constant dense<0.000000e+00> : vector<128xf32>
    %4 = vector.multi_reduction <add>, %2, %cst_5 [0] : vector<128x128xf32> to vector<128xf32>
    %5 = vector.shape_cast %4 : vector<128xf32> to vector<1x128xf32>
    %6 = arith.mulf %2, %2 : vector<128x128xf32>
    %cst_6 = arith.constant dense<0.000000e+00> : vector<128xf32>
    %7 = vector.multi_reduction <add>, %6, %cst_6 [0] : vector<128x128xf32> to vector<128xf32>
    %8 = vector.shape_cast %7 : vector<128xf32> to vector<1x128xf32>
    %9 = tpu.concatenate %5, %8 in 0 : vector<1x128xf32>, vector<1x128xf32> -> vector<2x128xf32>
    %c0_7 = arith.constant 0 : index
    %c0_8 = arith.constant 0 : index
    %c0_9 = arith.constant 0 : index
    %10 = vector.load %arg4[%c0_7, %c0_8, %c0_9] : memref<1x2x128xf32, #tpu.memory_space<vmem>>, vector<1x2x128xf32>
    %11 = vector.shape_cast %10 : vector<1x2x128xf32> to vector<2x128xf32>
    %12 = vector.shape_cast %9 : vector<2x128xf32> to vector<1x2x128xf32>
    tpu.vector_store %arg4[%c0_7, %c0_8, %c0_9], %12 {strides = array<i32>} : memref<1x2x128xf32, #tpu.memory_space<vmem>>, vector<1x2x128xf32>,
    return
  }
  func.func @transform_0(%arg0: i32) -> (i32, i32) {
    %c0_i32 = arith.constant 0 : i32
    %c0_i32_0 = arith.constant 0 : i32
    return %arg0, %c0_i32 : i32, i32
  }
  func.func @transform_1(%arg0: i32) -> (i32, i32) {
    %c0_i32 = arith.constant 0 : i32
    %c0_i32_0 = arith.constant 0 : i32
    %c0_i32_1 = arith.constant 0 : i32
    return %c0_i32, %c0_i32_0 : i32, i32
  }
  func.func @transform_2(%arg0: i32) -> (i32, i32) {
    %c0_i32 = arith.constant 0 : i32
    %c0_i32_0 = arith.constant 0 : i32
    return %arg0, %c0_i32 : i32, i32
  }
  func.func @transform_3(%arg0: i32) -> (i32, i32, i32) {
    %c0_i32 = arith.constant 0 : i32
    %c0_i32_0 = arith.constant 0 : i32
    %c0_i32_1 = arith.constant 0 : i32
    return %arg0, %c0_i32, %c0_i32_0 : i32, i32, i32
  }
}

module attributes {stable_mosaic.version = 11 : i64} {
  func.func @_bn_relu_apply_kernel(%arg0: i32, %arg1: memref<128x128xf32, #tpu.memory_space<vmem>>, %arg2: memref<1x128xf32, #tpu.memory_space<vmem>>, %arg3: memref<1x128xf32, #tpu.memory_space<vmem>>, %arg4: memref<128x128xf32, #tpu.memory_space<vmem>>) attributes {dimension_semantics = [#tpu.dimension_semantics<parallel>], iteration_bounds = array<i64: 4>, scalar_prefetch = 0 : i64, scratch_operands = 0 : i64, tpu.core_type = #tpu.core_type<tc>, window_params = [{transform_indices = @transform_0, window_bounds = array<i64: 128, 128>}, {pipeline_mode = #tpu.pipeline_mode<synchronous>, transform_indices = @transform_1, window_bounds = array<i64: 1, 128>}, {pipeline_mode = #tpu.pipeline_mode<synchronous>, transform_indices = @transform_2, window_bounds = array<i64: 1, 128>}, {transform_indices = @transform_3, window_bounds = array<i64: 128, 128>}]} {
    %c0 = arith.constant 0 : index
    %c0_0 = arith.constant 0 : index
    %0 = vector.load %arg1[%c0, %c0_0] : memref<128x128xf32, #tpu.memory_space<vmem>>, vector<128x128xf32>
    %c0_1 = arith.constant 0 : index
    %c0_2 = arith.constant 0 : index
    %1 = vector.load %arg2[%c0_1, %c0_2] : memref<1x128xf32, #tpu.memory_space<vmem>>, vector<1x128xf32>
    %2 = vector.broadcast %1 : vector<1x128xf32> to vector<128x128xf32>
    %3 = arith.mulf %0, %2 : vector<128x128xf32>
    %c0_3 = arith.constant 0 : index
    %c0_4 = arith.constant 0 : index
    %4 = vector.load %arg3[%c0_3, %c0_4] : memref<1x128xf32, #tpu.memory_space<vmem>>, vector<1x128xf32>
    %5 = vector.broadcast %4 : vector<1x128xf32> to vector<128x128xf32>
    %6 = arith.addf %3, %5 : vector<128x128xf32>
    %cst = arith.constant 0.000000e+00 : f32
    %7 = vector.broadcast %cst : f32 to vector<128x128xf32>
    %8 = arith.maximumf %6, %7 : vector<128x128xf32>
    %c0_5 = arith.constant 0 : index
    %c0_6 = arith.constant 0 : index
    %9 = vector.load %arg4[%c0_5, %c0_6] : memref<128x128xf32, #tpu.memory_space<vmem>>, vector<128x128xf32>
    tpu.vector_store %arg4[%c0_5, %c0_6], %8 {strides = array<i32>} : memref<128x128xf32, #tpu.memory_space<vmem>>, vector<128x128xf32>,
    return
  }
  func.func @transform_0(%arg0: i32) -> (i32, i32) {
    %c0_i32 = arith.constant 0 : i32
    %c0_i32_0 = arith.constant 0 : i32
    return %arg0, %c0_i32 : i32, i32
  }
  func.func @transform_1(%arg0: i32) -> (i32, i32) {
    %c0_i32 = arith.constant 0 : i32
    %c0_i32_0 = arith.constant 0 : i32
    %c0_i32_1 = arith.constant 0 : i32
    return %c0_i32, %c0_i32_0 : i32, i32
  }
  func.func @transform_2(%arg0: i32) -> (i32, i32) {
    %c0_i32 = arith.constant 0 : i32
    %c0_i32_0 = arith.constant 0 : i32
    %c0_i32_1 = arith.constant 0 : i32
    return %c0_i32, %c0_i32_0 : i32, i32
  }
  func.func @transform_3(%arg0: i32) -> (i32, i32) {
    %c0_i32 = arith.constant 0 : i32
    %c0_i32_0 = arith.constant 0 : i32
    return %arg0, %c0_i32 : i32, i32
  }
}

</mosaic_0001>

<llo_original>
// kernel: conv2d_bn_relu.2
$region0: #{conv2d_bn_relu.2}
  #allocation0 [shape = 'u32[]', space=smem, size = 0x4, offset = 0x4, fixed_abs, tag = 'smem constant byte address 0x4 - core index']
  #allocation1 [shape = 'u32[144,128]{1,0:T(1,128)}', space=vmem, size = 0x12000, scoped, tag = 'internal scratch']
  %s0 = inlined_call_operand.vmem [shape: f32[512,40], index: 0, kind: input, shape index: {}]
  %s1 = inlined_call_operand.vmem [shape: f32[40,128], index: 1, kind: input, shape index: {}]
  %s2 = inlined_call_operand.vmem [shape: f32[512,128], index: 2, kind: output, shape index: {0}]
  %s3 = inlined_call_operand.vmem [shape: f32[4,2,128], index: 3, kind: output, shape index: {1}]
  %4 = xla_tuple %s2, %s3
  %s5 = sld [smem:[#allocation0]]
  $region49: #{conv2d_bn_relu.2} parent=0
    _
  %s7 = ssub.s32 1, %s5
  %s8 = scalar_select 0, %s7, %s5
  loop: start=0, step=1, limit=6
  $region2: #{conv2d_bn_relu.2} parent=0 // loop_pre_header
    _
  $region3: #{conv2d_bn_relu.2} parent=0 // loop_header
    %s10 = sphi 0, %s14
    %p11 = scmp.ge.s32.totalorder %s10, 6
    %s20 = sphi 0, %s22
    %s23 = sphi 0, %s20
    %s24 = sphi 0, %s23
    %s40 = sphi 0, %s24
    %s44 = sphi 0, %s44
    %s46 = sphi 0, %s44
    %s47 = sphi 0, %s46
    %s61 = sphi 0, %s47
    %s67 = sphi 0, %s69
    %s70 = sphi 0, %s67
    %s71 = sphi 0, %s70
    %s87 = sphi 0, %s71
    %s93 = sphi 0, %s95
    %s96 = sphi 0, %s93
    %s97 = sphi 0, %s96
    %s113 = sphi 0, %s97
  $region4: #{conv2d_bn_relu.2} parent=0 // loop_header_branch
    %13 = sbr.rel (%p11) target = $region8
  $region5: #{conv2d_bn_relu.2} parent=0 // loop_body
    %s15 = ssub.s32 %s10, 1
    %s16 = ssub.s32 %s10, 2
    %s17 = sadd.s32 %s10, 1
    %s18 = ssub.s32 %s10, %s17
    %p19 = scmp.eq.s32.totalorder %s18, 0
    %s21 = sadd.s32 %s20, 1
    %s22 = scalar_select %p19, %s20, %s21
    %p25 = pneg %p19
    %p26 = scmp.eq.s32.totalorder %s10, 3
    %p27 = por %p25, %p26
    %p28 = scmp.ne.s32.totalorder %s20, %s23
    %p29 = scmp.eq.s32.totalorder %s10, 0
    %p30 = por %p28, %p29
    %p31 = scmp.ne.s32.totalorder %s20, %s23
    %p32 = scmp.eq.s32.totalorder %s15, 3
    %p33 = por %p31, %p32
    %p34 = scmp.ne.s32.totalorder %s23, %s24
    %p35 = scmp.eq.s32.totalorder %s15, 0
    %p36 = por %p34, %p35
    %p37 = scmp.ne.s32.totalorder %s23, %s24
    %p38 = scmp.eq.s32.totalorder %s16, 3
    %p39 = por %p37, %p38
    %p41 = scmp.ne.s32.totalorder %s24, %s40
    %p42 = scmp.eq.s32.totalorder %s16, 0
    %p43 = por %p41, %p42
    %s45 = sadd.s32 %s44, 1
    %p48 = scmp.eq.s32.totalorder %s10, 3
    %p49 = scmp.ne.s32.totalorder %s44, %s46
    %p50 = scmp.eq.s32.totalorder %s10, 0
    %p51 = por %p49, %p50
    %p52 = scmp.ne.s32.totalorder %s44, %s46
    %p53 = scmp.eq.s32.totalorder %s15, 3
    %p54 = por %p52, %p53
    %p55 = scmp.ne.s32.totalorder %s46, %s47
    %p56 = scmp.eq.s32.totalorder %s15, 0
    %p57 = por %p55, %p56
    %p58 = scmp.ne.s32.totalorder %s46, %s47
    %p59 = scmp.eq.s32.totalorder %s16, 3
    %p60 = por %p58, %p59
    %p62 = scmp.ne.s32.totalorder %s47, %s61
    %p63 = scmp.eq.s32.totalorder %s16, 0
    %p64 = por %p62, %p63
    %s65 = ssub.s32 %s10, %s17
    %p66 = scmp.eq.s32.totalorder %s65, 0
    %s68 = sadd.s32 %s67, 1
    %s69 = scalar_select %p66, %s67, %s68
    %p72 = pneg %p66
    %p73 = scmp.eq.s32.totalorder %s10, 3
    %p74 = por %p72, %p73
    %p75 = scmp.ne.s32.totalorder %s67, %s70
    %p76 = scmp.eq.s32.totalorder %s10, 0
    %p77 = por %p75, %p76
    %p78 = scmp.ne.s32.totalorder %s67, %s70
    %p79 = scmp.eq.s32.totalorder %s15, 3
    %p80 = por %p78, %p79
    %p81 = scmp.ne.s32.totalorder %s70, %s71
    %p82 = scmp.eq.s32.totalorder %s15, 0
    %p83 = por %p81, %p82
    %p84 = scmp.ne.s32.totalorder %s70, %s71
    %p85 = scmp.eq.s32.totalorder %s16, 3
    %p86 = por %p84, %p85
    %p88 = scmp.ne.s32.totalorder %s71, %s87
    %p89 = scmp.eq.s32.totalorder %s16, 0
    %p90 = por %p88, %p89
    %s91 = ssub.s32 %s10, %s17
    %p92 = scmp.eq.s32.totalorder %s91, 0
    %s94 = sadd.s32 %s93, 1
    %s95 = scalar_select %p92, %s93, %s94
    %p98 = pneg %p92
    %p99 = scmp.eq.s32.totalorder %s10, 3
    %p100 = por %p98, %p99
    %p101 = scmp.ne.s32.totalorder %s93, %s96
    %p102 = scmp.eq.s32.totalorder %s10, 0
    %p103 = por %p101, %p102
    %p104 = scmp.ne.s32.totalorder %s93, %s96
    %p105 = scmp.eq.s32.totalorder %s15, 3
    %p106 = por %p104, %p105
    %p107 = scmp.ne.s32.totalorder %s96, %s97
    %p108 = scmp.eq.s32.totalorder %s15, 0
    %p109 = por %p107, %p108
    %p110 = scmp.ne.s32.totalorder %s96, %s97
    %p111 = scmp.eq.s32.totalorder %s16, 3
    %p112 = por %p110, %p111
    %p114 = scmp.ne.s32.totalorder %s97, %s113
    %p115 = scmp.eq.s32.totalorder %s16, 0
    %p116 = por %p114, %p115
    %p117 = scmp.le.s32.totalorder 1, %s10
    %p118 = scmp.lt.s32.totalorder %s10, 5
    %p119 = pnand %p117, %p118
    %p120 = pneg %p119
    // Predicated region
    $region9: #{conv2d_bn_relu.2} parent=5 // pred_check
      _
    $region10: #{conv2d_bn_relu.2} parent=5 // pred_check_branch
      %122 = sbr.rel (%p119) target = $region12
    $region11: #{conv2d_bn_relu.2} parent=5 // pred_region
      %s123 = ssub.s32 %s10, 1
      // Predicated region
      $region13: #{conv2d_bn_relu.2} parent=11 // pred_check
        %p124 = pneg %p57
      $region14: #{conv2d_bn_relu.2} parent=11 // pred_check_branch
        %126 = sbr.rel (%p124) target = $region16
      $region15: #{conv2d_bn_relu.2} parent=11 // pred_region
        _
      $region16: #{conv2d_bn_relu.2} parent=11 // pred_fallthru
        _
    $region12: #{conv2d_bn_relu.2} parent=5 // pred_fallthru
      _
    %p127 = scmp.lt.s32.totalorder %s10, 4
    // Predicated region
    $region17: #{conv2d_bn_relu.2} parent=5 // pred_check
      %p128 = pneg %p127
    $region18: #{conv2d_bn_relu.2} parent=5 // pred_check_branch
      %130 = sbr.rel (%p128) target = $region20
    $region19: #{conv2d_bn_relu.2} parent=5 // pred_region
      // Predicated region
      $region21: #{conv2d_bn_relu.2} parent=19 // pred_check
        %p131 = pneg %p30
      $region22: #{conv2d_bn_relu.2} parent=19 // pred_check_branch
        %133 = sbr.rel (%p131) target = $region24
      $region23: #{conv2d_bn_relu.2} parent=19 // pred_region
        %s134 = smul.u32 16, %s10
        %p135 = scmp.lt.s32.totalorder %s134, 63
        %s136 = scalar_select %p135, %s134, 63
        %s137 = smul.addr %s136, 8
        %s138 = scalar_lea.vmem %s0, %s137
        %s139 = smul.u32 16, %s10
      $region24: #{conv2d_bn_relu.2} parent=19 // pred_fallthru
        _
    $region20: #{conv2d_bn_relu.2} parent=5 // pred_fallthru
      _
    %p140 = scmp.le.s32.totalorder 1, %s10
    %p141 = scmp.lt.s32.totalorder %s10, 5
    %p142 = pnand %p140, %p141
    %p143 = pneg %p142
    // Predicated region
    $region25: #{conv2d_bn_relu.2} parent=5 // pred_check
      _
    $region26: #{conv2d_bn_relu.2} parent=5 // pred_check_branch
      %145 = sbr.rel (%p142) target = $region28
    $region27: #{conv2d_bn_relu.2} parent=5 // pred_region
      %s146 = ssub.s32 %s10, 1
      %s147 = smul.u32 16, %s15
      %p148 = scmp.lt.s32.totalorder %s147, 63
      %s149 = scalar_select %p148, %s147, 63
      %s150 = smul.addr %s149, 8
      %s151 = scalar_lea.vmem %s0, %s150
      %p152 = pneg %p36
      %p153 = pneg %p33
      %p154 = pneg %p57
      %p155 = pneg %p54
      %p156 = pneg %p83
      %p157 = pneg %p80
      %s158 = smul.u32 16, %s15
      %p159 = scmp.lt.s32.totalorder %s158, 63
      %s160 = scalar_select %p159, %s158, 63
      %s161 = smul.addr %s160, 8
      %s162 = scalar_lea.vmem %s2, %s161
      %p163 = pneg %p109
      %p164 = pneg %p106
      %p165 = scmp.lt.s32.totalorder %s15, 3
      %s166 = scalar_select %p165, %s15, 3
      %s167 = smul.addr %s166, 2
      %s168 = scalar_lea.vmem %s3, %s167
      %s169 = smul.u32 16, %s15
      %p170 = scmp.lt.s32.totalorder %s169, 63
      %s171 = scalar_select %p170, %s169, 63
      %s172 = smul.addr %s171, 8
      %s173 = scalar_lea.vmem %s0, %s172
      %s174 = smul.u32 16, %s15
      %s175 = smul.u32 16, %s15
      %p176 = scmp.lt.s32.totalorder %s175, 63
      %s177 = scalar_select %p176, %s175, 63
      %s178 = smul.addr %s177, 8
      %s179 = scalar_lea.vmem %s2, %s178
      %s180 = smul.u32 16, %s15
      %p181 = scmp.lt.s32.totalorder %s15, 3
      %s182 = scalar_select %p181, %s15, 3
      %s183 = smul.addr %s182, 2
      %s184 = scalar_lea.vmem %s3, %s183
      %v185 = vld [vmem:[%s173] sm:$0xff]
      %v186 = vld [vmem:[%s173 + $0x8] sm:$0xff]
      %v187 = vld [vmem:[%s173 + $0x10] sm:$0xff]
      %v188 = vld [vmem:[%s173 + $0x18] sm:$0xff]
      %v189 = vld [vmem:[%s173 + $0x20] sm:$0xff]
      %v190 = vld [vmem:[%s173 + $0x28] sm:$0xff]
      %v191 = vld [vmem:[%s173 + $0x30] sm:$0xff]
      %v192 = vld [vmem:[%s173 + $0x38] sm:$0xff]
      %v193 = vld [vmem:[%s173 + $0x40] sm:$0xff]
      %v194 = vld [vmem:[%s173 + $0x48] sm:$0xff]
      %v195 = vld [vmem:[%s173 + $0x50] sm:$0xff]
      %v196 = vld [vmem:[%s173 + $0x58] sm:$0xff]
      %v197 = vld [vmem:[%s173 + $0x60] sm:$0xff]
      %v198 = vld [vmem:[%s173 + $0x68] sm:$0xff]
      %v199 = vld [vmem:[%s173 + $0x70] sm:$0xff]
      %v200 = vld [vmem:[%s173 + $0x78] sm:$0xff]
      %v201 = vld [vmem:[%s1] sm:$0xff]
      %v202 = vld [vmem:[%s1 + $0x8] sm:$0xff]
      %v203 = vld [vmem:[%s1 + $0x10] sm:$0xff]
      %v204 = vld [vmem:[%s1 + $0x18] sm:$0xff]
      %v205 = vld [vmem:[%s1 + $0x20] sm:$0xff]
      %vm206 = vcmask 326656
      %v208 = vsel %vm206, %v185, 0
      %v211 = vsel %vm206, %v186, 0
      %v214 = vsel %vm206, %v187, 0
      %v217 = vsel %vm206, %v188, 0
      %v220 = vsel %vm206, %v189, 0
      %v223 = vsel %vm206, %v190, 0
      %v226 = vsel %vm206, %v191, 0
      %v229 = vsel %vm206, %v192, 0
      %v232 = vsel %vm206, %v193, 0
      %v235 = vsel %vm206, %v194, 0
      %v238 = vsel %vm206, %v195, 0
      %v241 = vsel %vm206, %v196, 0
      %v244 = vsel %vm206, %v197, 0
      %v247 = vsel %vm206, %v198, 0
      %v250 = vsel %vm206, %v199, 0
      %v253 = vsel %vm206, %v200, 0
      %255 = vmatprep.subr.mxu0 0.0
      %256 = vmatpush1.msra.mxu0 %v201
      %257 = vmatprep.subr.mxu0 0.0
      %258 = vmatpush1.msra.mxu0 %v202
      %259 = vmatprep.subr.mxu0 0.0
      %260 = vmatpush1.msra.mxu0 %v203
      %261 = vmatprep.subr.mxu0 0.0
      %262 = vmatpush1.msra.mxu0 %v204
      %263 = vmatprep.subr.mxu0 0.0
      %264 = vmatpush1.msra.mxu0 %v205
      %265 = vmatprep.subr.mxu0 0.0
      %266 = vmatpush1.msra.mxu0 0.0
      %267 = vmatprep.subr.mxu0 0.0
      %268 = vmatpush1.msra.mxu0 0.0
      %269 = vmatprep.subr.mxu0 0.0
      %270 = vmatpush1.msra.mxu0 0.0
      %271 = vmatprep.subr.mxu0 0.0
      %272 = vmatpush1.msra.mxu0 0.0
      %273 = vmatprep.subr.mxu0 0.0
      %274 = vmatpush1.msra.mxu0 0.0
      %275 = vmatprep.subr.mxu0 0.0
      %276 = vmatpush1.msra.mxu0 0.0
      %277 = vmatprep.subr.mxu0 0.0
      %278 = vmatpush1.msra.mxu0 0.0
      %279 = vmatprep.subr.mxu0 0.0
      %280 = vmatpush1.msra.mxu0 0.0
      %281 = vmatprep.subr.mxu0 0.0
      %282 = vmatpush1.msra.mxu0 0.0
      %283 = vmatprep.subr.mxu0 0.0
      %284 = vmatpush1.msra.mxu0 0.0
      %285 = vmatprep.subr.mxu0 0.0
      %286 = vmatpush1.msra.mxu0 0.0
      %287 = vmatprep.subr.mxu0 0.0
      %288 = vmatpush1.msra.mxu0 0.0
      %289 = vmatprep.subr.mxu0 0.0
      %290 = vmatpush1.msra.mxu0 0.0
      %291 = vmatprep.subr.mxu0 0.0
      %292 = vmatpush1.msra.mxu0 0.0
      %293 = vmatprep.subr.mxu0 0.0
      %294 = vmatpush1.msra.mxu0 0.0
      %295 = vmatprep.subr.mxu0 0.0
      %296 = vmatpush1.msra.mxu0 0.0
      %297 = vmatprep.subr.mxu0 0.0
      %298 = vmatpush1.msra.mxu0 0.0
      %299 = vmatprep.subr.mxu0 0.0
      %300 = vmatpush1.msra.mxu0 0.0
      %301 = vmatprep.subr.mxu0 0.0
      %302 = vmatpush1.msra.mxu0 0.0
      %303 = vmatprep.subr.mxu0 0.0
      %304 = vmatpush1.msra.mxu0 0.0
      %305 = vmatprep.subr.mxu0 0.0
      %306 = vmatpush1.msra.mxu0 0.0
      %307 = vmatprep.subr.mxu0 0.0
      %308 = vmatpush1.msra.mxu0 0.0
      %309 = vmatprep.subr.mxu0 0.0
      %310 = vmatpush1.msra.mxu0 0.0
      %311 = vmatprep.subr.mxu0 0.0
      %312 = vmatpush1.msra.mxu0 0.0
      %313 = vmatprep.subr.mxu0 0.0
      %314 = vmatpush1.msra.mxu0 0.0
      %315 = vmatprep.subr.mxu0 0.0
      %316 = vmatpush1.msra.mxu0 0.0
      %317 = vmatprep.subr.mxu0 0.0
      %318 = vmatpush1.msra.mxu0 0.0
      %319 = vmatprep.mubr.f32.mxu0 0.0
      %320 = vmatmul.mubr.f32.gmra.mrb[0].mxu0 %v208
      %v321 = vpop.f32.mrb[0].mxu0
      %v322 = vadd.f32 0.0, %v321
      %v323 = vpop.f32.mrb[0].mxu0
      %324 = vmatprep.mubr.f32.mxu0 0.0
      %325 = vmatmul.mubr.f32.gmra.mrb[0].mxu0 %v211
      %v326 = vpop.f32.mrb[0].mxu0
      %v327 = vadd.f32 0.0, %v326
      %v328 = vpop.f32.mrb[0].mxu0
      %329 = vmatprep.mubr.f32.mxu0 0.0
      %330 = vmatmul.mubr.f32.gmra.mrb[0].mxu0 %v214
      %v331 = vpop.f32.mrb[0].mxu0
      %v332 = vadd.f32 0.0, %v331
      %v333 = vpop.f32.mrb[0].mxu0
      %334 = vmatprep.mubr.f32.mxu0 0.0
      %335 = vmatmul.mubr.f32.gmra.mrb[0].mxu0 %v217
      %v336 = vpop.f32.mrb[0].mxu0
      %v337 = vadd.f32 0.0, %v336
      %v338 = vpop.f32.mrb[0].mxu0
      %339 = vmatprep.mubr.f32.mxu0 0.0
      %340 = vmatmul.mubr.f32.gmra.mrb[0].mxu0 %v220
      %v341 = vpop.f32.mrb[0].mxu0
      %v342 = vadd.f32 0.0, %v341
      %v343 = vpop.f32.mrb[0].mxu0
      %344 = vmatprep.mubr.f32.mxu0 0.0
      %345 = vmatmul.mubr.f32.gmra.mrb[0].mxu0 %v223
      %v346 = vpop.f32.mrb[0].mxu0
      %v347 = vadd.f32 0.0, %v346
      %v348 = vpop.f32.mrb[0].mxu0
      %349 = vmatprep.mubr.f32.mxu0 0.0
      %350 = vmatmul.mubr.f32.gmra.mrb[0].mxu0 %v226
      %v351 = vpop.f32.mrb[0].mxu0
      %v352 = vadd.f32 0.0, %v351
      %v353 = vpop.f32.mrb[0].mxu0
      %354 = vmatprep.mubr.f32.mxu0 0.0
      %355 = vmatmul.mubr.f32.gmra.mrb[0].mxu0 %v229
      %v356 = vpop.f32.mrb[0].mxu0
      %v357 = vadd.f32 0.0, %v356
      %v358 = vpop.f32.mrb[0].mxu0
      %359 = vmatprep.mubr.f32.mxu0 0.0
      %360 = vmatmul.mubr.f32.gmra.mrb[0].mxu0 %v232
      %v361 = vpop.f32.mrb[0].mxu0
      %v362 = vadd.f32 0.0, %v361
      %v363 = vpop.f32.mrb[0].mxu0
      %364 = vmatprep.mubr.f32.mxu0 0.0
      %365 = vmatmul.mubr.f32.gmra.mrb[0].mxu0 %v235
      %v366 = vpop.f32.mrb[0].mxu0
      %v367 = vadd.f32 0.0, %v366
      %v368 = vpop.f32.mrb[0].mxu0
      %369 = vmatprep.mubr.f32.mxu0 0.0
      %370 = vmatmul.mubr.f32.gmra.mrb[0].mxu0 %v238
      %v371 = vpop.f32.mrb[0].mxu0
      %v372 = vadd.f32 0.0, %v371
      %v373 = vpop.f32.mrb[0].mxu0
      %374 = vmatprep.mubr.f32.mxu0 0.0
      %375 = vmatmul.mubr.f32.gmra.mrb[0].mxu0 %v241
      %v376 = vpop.f32.mrb[0].mxu0
      %v377 = vadd.f32 0.0, %v376
      %v378 = vpop.f32.mrb[0].mxu0
      %379 = vmatprep.mubr.f32.mxu0 0.0
      %380 = vmatmul.mubr.f32.gmra.mrb[0].mxu0 %v244
      %v381 = vpop.f32.mrb[0].mxu0
      %v382 = vadd.f32 0.0, %v381
      %v383 = vpop.f32.mrb[0].mxu0
      %384 = vmatprep.mubr.f32.mxu0 0.0
      %385 = vmatmul.mubr.f32.gmra.mrb[0].mxu0 %v247
      %v386 = vpop.f32.mrb[0].mxu0
      %v387 = vadd.f32 0.0, %v386
      %v388 = vpop.f32.mrb[0].mxu0
      %389 = vmatprep.mubr.f32.mxu0 0.0
      %390 = vmatmul.mubr.f32.gmra.mrb[0].mxu0 %v250
      %v391 = vpop.f32.mrb[0].mxu0
      %v392 = vadd.f32 0.0, %v391
      %v393 = vpop.f32.mrb[0].mxu0
      %394 = vmatprep.mubr.f32.mxu0 0.0
      %395 = vmatmul.mubr.f32.gmra.mrb[0].mxu0 %v253
      %v396 = vpop.f32.mrb[0].mxu0
      %v397 = vadd.f32 0.0, %v396
      %v398 = vpop.f32.mrb[0].mxu0
      %399 = vdwg.mxu0
      %400 = vst [vmem:[%s179] sm:$0xff] %v322
      %401 = vst [vmem:[%s179 + $0x8] sm:$0xff] %v327
      %402 = vst [vmem:[%s179 + $0x10] sm:$0xff] %v332
      %403 = vst [vmem:[%s179 + $0x18] sm:$0xff] %v337
      %404 = vst [vmem:[%s179 + $0x20] sm:$0xff] %v342
      %405 = vst [vmem:[%s179 + $0x28] sm:$0xff] %v347
      %406 = vst [vmem:[%s179 + $0x30] sm:$0xff] %v352
      %407 = vst [vmem:[%s179 + $0x38] sm:$0xff] %v357
      %408 = vst [vmem:[%s179 + $0x40] sm:$0xff] %v362
      %409 = vst [vmem:[%s179 + $0x48] sm:$0xff] %v367
      %410 = vst [vmem:[%s179 + $0x50] sm:$0xff] %v372
      %411 = vst [vmem:[%s179 + $0x58] sm:$0xff] %v377
      %412 = vst [vmem:[%s179 + $0x60] sm:$0xff] %v382
      %413 = vst [vmem:[%s179 + $0x68] sm:$0xff] %v387
      %414 = vst [vmem:[%s179 + $0x70] sm:$0xff] %v392
      %415 = vst [vmem:[%s179 + $0x78] sm:$0xff] %v397
      %v416 = vadd.f32 %v322, %v327
      %v417 = vadd.f32 %v416, %v332
      %v418 = vadd.f32 %v417, %v337
      %v419 = vadd.f32 %v418, %v342
      %v420 = vadd.f32 %v419, %v347
      %v421 = vadd.f32 %v420, %v352
      %v422 = vadd.f32 %v421, %v357
      %v423 = vadd.f32 %v422, %v362
      %v424 = vadd.f32 %v423, %v367
      %v425 = vadd.f32 %v424, %v372
      %v426 = vadd.f32 %v425, %v377
      %v427 = vadd.f32 %v426, %v382
      %v428 = vadd.f32 %v427, %v387
      %v429 = vadd.f32 %v428, %v392
      %v430 = vadd.f32 %v429, %v397
      %v431 = vrot.slane %v430, 4
      %v432 = vadd.f32 %v430, %v431
      %v433 = vrot.slane %v432, 2
      %v434 = vadd.f32 %v432, %v433
      %v435 = vrot.slane %v434, 1
      %v436 = vadd.f32 %v434, %v435
      %v437 = vmul.f32 %v322, %v322
      %v438 = vmul.f32 %v327, %v327
      %v439 = vmul.f32 %v332, %v332
      %v440 = vmul.f32 %v337, %v337
      %v441 = vmul.f32 %v342, %v342
      %v442 = vmul.f32 %v347, %v347
      %v443 = vmul.f32 %v352, %v352
      %v444 = vmul.f32 %v357, %v357
      %v445 = vmul.f32 %v362, %v362
      %v446 = vmul.f32 %v367, %v367
      %v447 = vmul.f32 %v372, %v372
      %v448 = vmul.f32 %v377, %v377
      %v449 = vmul.f32 %v382, %v382
      %v450 = vmul.f32 %v387, %v387
      %v451 = vmul.f32 %v392, %v392
      %v452 = vmul.f32 %v397, %v397
      %v453 = vadd.f32 %v437, %v438
      %v454 = vadd.f32 %v453, %v439
      %v455 = vadd.f32 %v454, %v440
      %v456 = vadd.f32 %v455, %v441
      %v457 = vadd.f32 %v456, %v442
      %v458 = vadd.f32 %v457, %v443
      %v459 = vadd.f32 %v458, %v444
      %v460 = vadd.f32 %v459, %v445
      %v461 = vadd.f32 %v460, %v446
      %v462 = vadd.f32 %v461, %v447
      %v463 = vadd.f32 %v462, %v448
      %v464 = vadd.f32 %v463, %v449
      %v465 = vadd.f32 %v464, %v450
      %v466 = vadd.f32 %v465, %v451
      %v467 = vadd.f32 %v466, %v452
      %v468 = vrot.slane %v467, 4
      %v469 = vadd.f32 %v467, %v468
      %v470 = vrot.slane %v469, 2
      %v471 = vadd.f32 %v469, %v470
      %v472 = vrot.slane %v471, 1
      %v473 = vadd.f32 %v471, %v472
      %vm474 = vcmask 1040384
      %v475 = vsel %vm474, %v436, %v473
      %476 = vst [vmem:[%s184] sm:$0x3] %v475
      %s477 = smul.u32 16, %s15
      %p478 = scmp.lt.s32.totalorder %s477, 63
      %s479 = scalar_select %p478, %s477, 63
      %s480 = smul.addr %s479, 8
      %s481 = scalar_lea.vmem %s2, %s480
      %p482 = scmp.lt.s32.totalorder %s15, 3
      %s483 = scalar_select %p482, %s15, 3
      %s484 = smul.addr %s483, 2
      %s485 = scalar_lea.vmem %s3, %s484
      // Predicated region
      $region29: #{conv2d_bn_relu.2} parent=27 // pred_check
        %p486 = pneg %p80
      $region30: #{conv2d_bn_relu.2} parent=27 // pred_check_branch
        %488 = sbr.rel (%p486) target = $region32
      $region31: #{conv2d_bn_relu.2} parent=27 // pred_region
        %s489 = smul.u32 16, %s15
      $region32: #{conv2d_bn_relu.2} parent=27 // pred_fallthru
        _
      // Predicated region
      $region33: #{conv2d_bn_relu.2} parent=27 // pred_check
        %p490 = pneg %p106
      $region34: #{conv2d_bn_relu.2} parent=27 // pred_check_branch
        %492 = sbr.rel (%p490) target = $region36
      $region35: #{conv2d_bn_relu.2} parent=27 // pred_region
        _
      $region36: #{conv2d_bn_relu.2} parent=27 // pred_fallthru
        _
    $region28: #{conv2d_bn_relu.2} parent=5 // pred_fallthru
      _
    %p493 = scmp.le.s32.totalorder 2, %s10
    // Predicated region
    $region37: #{conv2d_bn_relu.2} parent=5 // pred_check
      %p494 = pneg %p493
    $region38: #{conv2d_bn_relu.2} parent=5 // pred_check_branch
      %496 = sbr.rel (%p494) target = $region40
    $region39: #{conv2d_bn_relu.2} parent=5 // pred_region
      %s497 = ssub.s32 %s10, 2
      // Predicated region
      $region41: #{conv2d_bn_relu.2} parent=39 // pred_check
        %p498 = pneg %p86
      $region42: #{conv2d_bn_relu.2} parent=39 // pred_check_branch
        %500 = sbr.rel (%p498) target = $region44
      $region43: #{conv2d_bn_relu.2} parent=39 // pred_region
        %s501 = smul.u32 16, %s16
        %p502 = scmp.lt.s32.totalorder %s501, 63
        %s503 = scalar_select %p502, %s501, 63
        %s504 = smul.addr %s503, 8
        %s505 = scalar_lea.vmem %s2, %s504
      $region44: #{conv2d_bn_relu.2} parent=39 // pred_fallthru
        _
      // Predicated region
      $region45: #{conv2d_bn_relu.2} parent=39 // pred_check
        %p506 = pneg %p112
      $region46: #{conv2d_bn_relu.2} parent=39 // pred_check_branch
        %508 = sbr.rel (%p506) target = $region48
      $region47: #{conv2d_bn_relu.2} parent=39 // pred_region
        %p509 = scmp.lt.s32.totalorder %s16, 3
        %s510 = scalar_select %p509, %s16, 3
        %s511 = smul.addr %s510, 2
        %s512 = scalar_lea.vmem %s3, %s511
      $region48: #{conv2d_bn_relu.2} parent=39 // pred_fallthru
        _
    $region40: #{conv2d_bn_relu.2} parent=5 // pred_fallthru
      _
  $region6: #{conv2d_bn_relu.2} parent=0 // loop_footer
    %s14 = sadd.s32 1, %s10
  $region7: #{conv2d_bn_relu.2} parent=0 // loop_footer_branch
    %9 = sbr.rel target = $region3
  $region8: #{conv2d_bn_relu.2} parent=0 // loop_exit
    _

// kernel: conv2d_bn_relu.3
$region0: #{conv2d_bn_relu.3}
  #allocation0 [shape = 'u32[]', space=smem, size = 0x4, offset = 0x4, fixed_abs, tag = 'smem constant byte address 0x4 - core index']
  #allocation1 [shape = 'u32[144,128]{1,0:T(1,128)}', space=vmem, size = 0x12000, scoped, tag = 'internal scratch']
  %s0 = inlined_call_operand.vmem [shape: f32[512,128], index: 0, kind: input, shape index: {}, may-alias: {0,3}]
  %s1 = inlined_call_operand.vmem [shape: f32[1,128], index: 1, kind: input, shape index: {}]
  %s2 = inlined_call_operand.vmem [shape: f32[1,128], index: 2, kind: input, shape index: {}]
  %s3 = inlined_call_operand.vmem [shape: f32[512,128], index: 3, kind: output, shape index: {}, may-alias: {0,3}]
  %s4 = sld [smem:[#allocation0]]
  $region45: #{conv2d_bn_relu.3} parent=0
    _
  %s6 = ssub.s32 1, %s4
  %s7 = scalar_select 0, %s6, %s4
  loop: start=0, step=1, limit=6
  $region2: #{conv2d_bn_relu.3} parent=0 // loop_pre_header
    _
  $region3: #{conv2d_bn_relu.3} parent=0 // loop_header
    %s9 = sphi 0, %s13
    %p10 = scmp.ge.s32.totalorder %s9, 6
    %s19 = sphi 0, %s21
    %s22 = sphi 0, %s19
    %s23 = sphi 0, %s22
    %s39 = sphi 0, %s23
    %s43 = sphi 0, %s43
    %s45 = sphi 0, %s43
    %s46 = sphi 0, %s45
    %s60 = sphi 0, %s46
    %s64 = sphi 0, %s64
    %s66 = sphi 0, %s64
    %s67 = sphi 0, %s66
    %s81 = sphi 0, %s67
    %s87 = sphi 0, %s89
    %s90 = sphi 0, %s87
    %s91 = sphi 0, %s90
    %s107 = sphi 0, %s91
  $region4: #{conv2d_bn_relu.3} parent=0 // loop_header_branch
    %12 = sbr.rel (%p10) target = $region8
  $region5: #{conv2d_bn_relu.3} parent=0 // loop_body
    %s14 = ssub.s32 %s9, 1
    %s15 = ssub.s32 %s9, 2
    %s16 = sadd.s32 %s9, 1
    %s17 = ssub.s32 %s9, %s16
    %p18 = scmp.eq.s32.totalorder %s17, 0
    %s20 = sadd.s32 %s19, 1
    %s21 = scalar_select %p18, %s19, %s20
    %p24 = pneg %p18
    %p25 = scmp.eq.s32.totalorder %s9, 3
    %p26 = por %p24, %p25
    %p27 = scmp.ne.s32.totalorder %s19, %s22
    %p28 = scmp.eq.s32.totalorder %s9, 0
    %p29 = por %p27, %p28
    %p30 = scmp.ne.s32.totalorder %s19, %s22
    %p31 = scmp.eq.s32.totalorder %s14, 3
    %p32 = por %p30, %p31
    %p33 = scmp.ne.s32.totalorder %s22, %s23
    %p34 = scmp.eq.s32.totalorder %s14, 0
    %p35 = por %p33, %p34
    %p36 = scmp.ne.s32.totalorder %s22, %s23
    %p37 = scmp.eq.s32.totalorder %s15, 3
    %p38 = por %p36, %p37
    %p40 = scmp.ne.s32.totalorder %s23, %s39
    %p41 = scmp.eq.s32.totalorder %s15, 0
    %p42 = por %p40, %p41
    %s44 = sadd.s32 %s43, 1
    %p47 = scmp.eq.s32.totalorder %s9, 3
    %p48 = scmp.ne.s32.totalorder %s43, %s45
    %p49 = scmp.eq.s32.totalorder %s9, 0
    %p50 = por %p48, %p49
    %p51 = scmp.ne.s32.totalorder %s43, %s45
    %p52 = scmp.eq.s32.totalorder %s14, 3
    %p53 = por %p51, %p52
    %p54 = scmp.ne.s32.totalorder %s45, %s46
    %p55 = scmp.eq.s32.totalorder %s14, 0
    %p56 = por %p54, %p55
    %p57 = scmp.ne.s32.totalorder %s45, %s46
    %p58 = scmp.eq.s32.totalorder %s15, 3
    %p59 = por %p57, %p58
    %p61 = scmp.ne.s32.totalorder %s46, %s60
    %p62 = scmp.eq.s32.totalorder %s15, 0
    %p63 = por %p61, %p62
    %s65 = sadd.s32 %s64, 1
    %p68 = scmp.eq.s32.totalorder %s9, 3
    %p69 = scmp.ne.s32.totalorder %s64, %s66
    %p70 = scmp.eq.s32.totalorder %s9, 0
    %p71 = por %p69, %p70
    %p72 = scmp.ne.s32.totalorder %s64, %s66
    %p73 = scmp.eq.s32.totalorder %s14, 3
    %p74 = por %p72, %p73
    %p75 = scmp.ne.s32.totalorder %s66, %s67
    %p76 = scmp.eq.s32.totalorder %s14, 0
    %p77 = por %p75, %p76
    %p78 = scmp.ne.s32.totalorder %s66, %s67
    %p79 = scmp.eq.s32.totalorder %s15, 3
    %p80 = por %p78, %p79
    %p82 = scmp.ne.s32.totalorder %s67, %s81
    %p83 = scmp.eq.s32.totalorder %s15, 0
    %p84 = por %p82, %p83
    %s85 = ssub.s32 %s9, %s16
    %p86 = scmp.eq.s32.totalorder %s85, 0
    %s88 = sadd.s32 %s87, 1
    %s89 = scalar_select %p86, %s87, %s88
    %p92 = pneg %p86
    %p93 = scmp.eq.s32.totalorder %s9, 3
    %p94 = por %p92, %p93
    %p95 = scmp.ne.s32.totalorder %s87, %s90
    %p96 = scmp.eq.s32.totalorder %s9, 0
    %p97 = por %p95, %p96
    %p98 = scmp.ne.s32.totalorder %s87, %s90
    %p99 = scmp.eq.s32.totalorder %s14, 3
    %p100 = por %p98, %p99
    %p101 = scmp.ne.s32.totalorder %s90, %s91
    %p102 = scmp.eq.s32.totalorder %s14, 0
    %p103 = por %p101, %p102
    %p104 = scmp.ne.s32.totalorder %s90, %s91
    %p105 = scmp.eq.s32.totalorder %s15, 3
    %p106 = por %p104, %p105
    %p108 = scmp.ne.s32.totalorder %s91, %s107
    %p109 = scmp.eq.s32.totalorder %s15, 0
    %p110 = por %p108, %p109
    %p111 = scmp.le.s32.totalorder 1, %s9
    %p112 = scmp.lt.s32.totalorder %s9, 5
    %p113 = pnand %p111, %p112
    %p114 = pneg %p113
    // Predicated region
    $region9: #{conv2d_bn_relu.3} parent=5 // pred_check
      _
    $region10: #{conv2d_bn_relu.3} parent=5 // pred_check_branch
      %116 = sbr.rel (%p113) target = $region12
    $region11: #{conv2d_bn_relu.3} parent=5 // pred_region
      %s117 = ssub.s32 %s9, 1
      // Predicated region
      $region13: #{conv2d_bn_relu.3} parent=11 // pred_check
        %p118 = pneg %p56
      $region14: #{conv2d_bn_relu.3} parent=11 // pred_check_branch
        %120 = sbr.rel (%p118) target = $region16
      $region15: #{conv2d_bn_relu.3} parent=11 // pred_region
        _
      $region16: #{conv2d_bn_relu.3} parent=11 // pred_fallthru
        _
      // Predicated region
      $region17: #{conv2d_bn_relu.3} parent=11 // pred_check
        %p121 = pneg %p77
      $region18: #{conv2d_bn_relu.3} parent=11 // pred_check_branch
        %123 = sbr.rel (%p121) target = $region20
      $region19: #{conv2d_bn_relu.3} parent=11 // pred_region
        _
      $region20: #{conv2d_bn_relu.3} parent=11 // pred_fallthru
        _
    $region12: #{conv2d_bn_relu.3} parent=5 // pred_fallthru
      _
    %p124 = scmp.lt.s32.totalorder %s9, 4
    // Predicated region
    $region21: #{conv2d_bn_relu.3} parent=5 // pred_check
      %p125 = pneg %p124
    $region22: #{conv2d_bn_relu.3} parent=5 // pred_check_branch
      %127 = sbr.rel (%p125) target = $region24
    $region23: #{conv2d_bn_relu.3} parent=5 // pred_region
      // Predicated region
      $region25: #{conv2d_bn_relu.3} parent=23 // pred_check
        %p128 = pneg %p29
      $region26: #{conv2d_bn_relu.3} parent=23 // pred_check_branch
        %130 = sbr.rel (%p128) target = $region28
      $region27: #{conv2d_bn_relu.3} parent=23 // pred_region
        %s131 = smul.u32 16, %s9
        %p132 = scmp.lt.s32.totalorder %s131, 63
        %s133 = scalar_select %p132, %s131, 63
        %s134 = smul.addr %s133, 8
        %s135 = scalar_lea.vmem %s0, %s134
        %s136 = smul.u32 16, %s9
      $region28: #{conv2d_bn_relu.3} parent=23 // pred_fallthru
        _
    $region24: #{conv2d_bn_relu.3} parent=5 // pred_fallthru
      _
    %p137 = scmp.le.s32.totalorder 1, %s9
    %p138 = scmp.lt.s32.totalorder %s9, 5
    %p139 = pnand %p137, %p138
    %p140 = pneg %p139
    // Predicated region
    $region29: #{conv2d_bn_relu.3} parent=5 // pred_check
      _
    $region30: #{conv2d_bn_relu.3} parent=5 // pred_check_branch
      %142 = sbr.rel (%p139) target = $region32
    $region31: #{conv2d_bn_relu.3} parent=5 // pred_region
      %s143 = ssub.s32 %s9, 1
      %s144 = smul.u32 16, %s14
      %p145 = scmp.lt.s32.totalorder %s144, 63
      %s146 = scalar_select %p145, %s144, 63
      %s147 = smul.addr %s146, 8
      %s148 = scalar_lea.vmem %s0, %s147
      %p149 = pneg %p35
      %p150 = pneg %p32
      %p151 = pneg %p56
      %p152 = pneg %p53
      %p153 = pneg %p77
      %p154 = pneg %p74
      %p155 = pneg %p103
      %p156 = pneg %p100
      %s157 = smul.u32 16, %s14
      %p158 = scmp.lt.s32.totalorder %s157, 63
      %s159 = scalar_select %p158, %s157, 63
      %s160 = smul.addr %s159, 8
      %s161 = scalar_lea.vmem %s3, %s160
      %s162 = smul.u32 16, %s14
      %p163 = scmp.lt.s32.totalorder %s162, 63
      %s164 = scalar_select %p163, %s162, 63
      %s165 = smul.addr %s164, 8
      %s166 = scalar_lea.vmem %s0, %s165
      %s167 = smul.u32 16, %s14
      %s168 = smul.u32 16, %s14
      %p169 = scmp.lt.s32.totalorder %s168, 63
      %s170 = scalar_select %p169, %s168, 63
      %s171 = smul.addr %s170, 8
      %s172 = scalar_lea.vmem %s3, %s171
      %s173 = smul.u32 16, %s14
      %v174 = vld [vmem:[%s166] sm:$0xff]
      %v175 = vld [vmem:[%s166 + $0x8] sm:$0xff]
      %v176 = vld [vmem:[%s166 + $0x10] sm:$0xff]
      %v177 = vld [vmem:[%s166 + $0x18] sm:$0xff]
      %v178 = vld [vmem:[%s166 + $0x20] sm:$0xff]
      %v179 = vld [vmem:[%s166 + $0x28] sm:$0xff]
      %v180 = vld [vmem:[%s166 + $0x30] sm:$0xff]
      %v181 = vld [vmem:[%s166 + $0x38] sm:$0xff]
      %v182 = vld [vmem:[%s166 + $0x40] sm:$0xff]
      %v183 = vld [vmem:[%s166 + $0x48] sm:$0xff]
      %v184 = vld [vmem:[%s166 + $0x50] sm:$0xff]
      %v185 = vld [vmem:[%s166 + $0x58] sm:$0xff]
      %v186 = vld [vmem:[%s166 + $0x60] sm:$0xff]
      %v187 = vld [vmem:[%s166 + $0x68] sm:$0xff]
      %v188 = vld [vmem:[%s166 + $0x70] sm:$0xff]
      %v189 = vld [vmem:[%s166 + $0x78] sm:$0xff]
      %v190 = vld [vmem:[%s1] sm:$0x1]
      %v192 = vlaneseq
      %v193 = vshrl.u32 %v192, 7
      %v194 = vsub.s32 0, %v193
      %v195 = vrot.slane %v190, %v194
      %v197 = vmul.f32 %v174, %v195
      %v198 = vmul.f32 %v175, %v195
      %v199 = vmul.f32 %v176, %v195
      %v200 = vmul.f32 %v177, %v195
      %v201 = vmul.f32 %v178, %v195
      %v202 = vmul.f32 %v179, %v195
      %v203 = vmul.f32 %v180, %v195
      %v204 = vmul.f32 %v181, %v195
      %v205 = vmul.f32 %v182, %v195
      %v206 = vmul.f32 %v183, %v195
      %v207 = vmul.f32 %v184, %v195
      %v208 = vmul.f32 %v185, %v195
      %v209 = vmul.f32 %v186, %v195
      %v210 = vmul.f32 %v187, %v195
      %v211 = vmul.f32 %v188, %v195
      %v212 = vmul.f32 %v189, %v195
      %v213 = vld [vmem:[%s2] sm:$0x1]
      %v215 = vlaneseq
      %v216 = vshrl.u32 %v215, 7
      %v217 = vsub.s32 0, %v216
      %v218 = vrot.slane %v213, %v217
      %v220 = vadd.f32 %v197, %v218
      %v221 = vadd.f32 %v198, %v218
      %v222 = vadd.f32 %v199, %v218
      %v223 = vadd.f32 %v200, %v218
      %v224 = vadd.f32 %v201, %v218
      %v225 = vadd.f32 %v202, %v218
      %v226 = vadd.f32 %v203, %v218
      %v227 = vadd.f32 %v204, %v218
      %v228 = vadd.f32 %v205, %v218
      %v229 = vadd.f32 %v206, %v218
      %v230 = vadd.f32 %v207, %v218
      %v231 = vadd.f32 %v208, %v218
      %v232 = vadd.f32 %v209, %v218
      %v233 = vadd.f32 %v210, %v218
      %v234 = vadd.f32 %v211, %v218
      %v235 = vadd.f32 %v212, %v218
      %v236 = vmax.f32 %v220, 0.0
      %v237 = vmax.f32 %v221, 0.0
      %v238 = vmax.f32 %v222, 0.0
      %v239 = vmax.f32 %v223, 0.0
      %v240 = vmax.f32 %v224, 0.0
      %v241 = vmax.f32 %v225, 0.0
      %v242 = vmax.f32 %v226, 0.0
      %v243 = vmax.f32 %v227, 0.0
      %v244 = vmax.f32 %v228, 0.0
      %v245 = vmax.f32 %v229, 0.0
      %v246 = vmax.f32 %v230, 0.0
      %v247 = vmax.f32 %v231, 0.0
      %v248 = vmax.f32 %v232, 0.0
      %v249 = vmax.f32 %v233, 0.0
      %v250 = vmax.f32 %v234, 0.0
      %v251 = vmax.f32 %v235, 0.0
      %252 = vst [vmem:[%s172] sm:$0xff] %v236
      %253 = vst [vmem:[%s172 + $0x8] sm:$0xff] %v237
      %254 = vst [vmem:[%s172 + $0x10] sm:$0xff] %v238
      %255 = vst [vmem:[%s172 + $0x18] sm:$0xff] %v239
      %256 = vst [vmem:[%s172 + $0x20] sm:$0xff] %v240
      %257 = vst [vmem:[%s172 + $0x28] sm:$0xff] %v241
      %258 = vst [vmem:[%s172 + $0x30] sm:$0xff] %v242
      %259 = vst [vmem:[%s172 + $0x38] sm:$0xff] %v243
      %260 = vst [vmem:[%s172 + $0x40] sm:$0xff] %v244
      %261 = vst [vmem:[%s172 + $0x48] sm:$0xff] %v245
      %262 = vst [vmem:[%s172 + $0x50] sm:$0xff] %v246
      %263 = vst [vmem:[%s172 + $0x58] sm:$0xff] %v247
      %264 = vst [vmem:[%s172 + $0x60] sm:$0xff] %v248
      %265 = vst [vmem:[%s172 + $0x68] sm:$0xff] %v249
      %266 = vst [vmem:[%s172 + $0x70] sm:$0xff] %v250
      %267 = vst [vmem:[%s172 + $0x78] sm:$0xff] %v251
      %s268 = smul.u32 16, %s14
      %p269 = scmp.lt.s32.totalorder %s268, 63
      %s270 = scalar_select %p269, %s268, 63
      %s271 = smul.addr %s270, 8
      %s272 = scalar_lea.vmem %s3, %s271
      // Predicated region
      $region33: #{conv2d_bn_relu.3} parent=31 // pred_check
        %p273 = pneg %p100
      $region34: #{conv2d_bn_relu.3} parent=31 // pred_check_branch
        %275 = sbr.rel (%p273) target = $region36
      $region35: #{conv2d_bn_relu.3} parent=31 // pred_region
        %s276 = smul.u32 16, %s14
      $region36: #{conv2d_bn_relu.3} parent=31 // pred_fallthru
        _
    $region32: #{conv2d_bn_relu.3} parent=5 // pred_fallthru
      _
    %p277 = scmp.le.s32.totalorder 2, %s9
    // Predicated region
    $region37: #{conv2d_bn_relu.3} parent=5 // pred_check
      %p278 = pneg %p277
    $region38: #{conv2d_bn_relu.3} parent=5 // pred_check_branch
      %280 = sbr.rel (%p278) target = $region40
    $region39: #{conv2d_bn_relu.3} parent=5 // pred_region
      %s281 = ssub.s32 %s9, 2
      // Predicated region
      $region41: #{conv2d_bn_relu.3} parent=39 // pred_check
        %p282 = pneg %p106
      $region42: #{conv2d_bn_relu.3} parent=39 // pred_check_branch
        %284 = sbr.rel (%p282) target = $region44
      $region43: #{conv2d_bn_relu.3} parent=39 // pred_region
        %s285 = smul.u32 16, %s15
        %p286 = scmp.lt.s32.totalorder %s285, 63
        %s287 = scalar_select %p286, %s285, 63
        %s288 = smul.addr %s287, 8
        %s289 = scalar_lea.vmem %s3, %s288
      $region44: #{conv2d_bn_relu.3} parent=39 // pred_fallthru
        _
    $region40: #{conv2d_bn_relu.3} parent=5 // pred_fallthru
      _
  $region6: #{conv2d_bn_relu.3} parent=0 // loop_footer
    %s13 = sadd.s32 1, %s9
  $region7: #{conv2d_bn_relu.3} parent=0 // loop_footer_branch
    %8 = sbr.rel target = $region3
  $region8: #{conv2d_bn_relu.3} parent=0 // loop_exit
    _

</llo_original>
